<compile_context>
chip_gen: v7x
topology: tpu7x:2x2x1
jax: 0.10.0
libtpu: 0.0.40
codegen_flags: <defaults>
</compile_context>

<pallas_src>
import functools

import jax
import jax.numpy as jnp
from jax.experimental import pallas as pl
from jax.experimental.pallas import tpu as pltpu


# ----------------------------------------------------------------------------
# Fused kernel: 1x1 conv (MXU matmul) + bias + in-kernel nearest H-replication.
# ----------------------------------------------------------------------------
def _lateral_fused_kernel(x_ref, w_ref, b_ref, up_ref, o_ref, *, scale):
    # x_ref : (1, th*W, Cin)   current-level rows for this tile (NHWC flattened)
    # w_ref : (Cin, Cout)      1x1 conv weight
    # b_ref : (1, Cout)        conv bias
    # up_ref: (1, tc, W, Cout) coarse prev rows (already W-upsampled), tc=th/scale
    # o_ref : (1, th, W, Cout)
    _, th, W, Cout = o_ref.shape
    tc = th // scale

    proj = jnp.dot(x_ref[0], w_ref[...], preferred_element_type=jnp.float32)
    proj = proj + b_ref[...]                    # (th*W, Cout), f32 epilogue
    proj = proj.reshape(th, W, Cout)            # lane dim unchanged, W % 8 == 0

    u = up_ref[0]                               # (tc, W, Cout)
    # nearest-neighbour along H: repeat each coarse row `scale` times.  This is
    # a leading-axis broadcast + leading-dim merge -> no sublane/lane shuffles.
    u_fine = jnp.broadcast_to(u[:, None, :, :], (tc, scale, W, Cout))
    u_fine = u_fine.reshape(th, W, Cout)

    o_ref[0] = (proj + u_fine).astype(o_ref.dtype)


def _fused_path(prev, cur, weight, bias, *, target_rows):
    N, Cin, H, W = cur.shape
    Cout = weight.shape[0]
    Hp, Wp = prev.shape[-2:]
    s = H // Hp                                          # integer H scale

    # W-direction nearest gather on the *coarse* tensor, already in NHWC, so the
    # only materialized intermediate is (N, Hp, W, Cout) -- `scale`x smaller than
    # the full upsampled map, and never transposed at full resolution.
    idx_w = (jnp.arange(W, dtype=jnp.int32) * Wp) // W   # exact integer nearest
    prev_nhwc = jnp.transpose(prev, (0, 2, 3, 1))        # (N, Hp, Wp, Cout) small
    up_w = jnp.take(prev_nhwc, idx_w, axis=2)            # (N, Hp, W,  Cout)

    x = jnp.transpose(cur, (0, 2, 3, 1)).reshape(N, H * W, Cin)
    w2d = weight.reshape(Cout, Cin).T                    # (Cin, Cout)
    b2d = bias.reshape(1, Cout)

    # Rows of H per tile: multiple of the scale, ~target_rows flattened rows.
    th = max(s, min(H, (max(1, target_rows // W) // s) * s))
    tc = th // s
    n_h = pl.cdiv(H, th)                                 # ragged last tile is OK
    grid = (N, n_h)

    out_nhwc = pl.pallas_call(
        functools.partial(_lateral_fused_kernel, scale=s),
        out_shape=jax.ShapeDtypeStruct((N, H, W, Cout), cur.dtype),
        grid_spec=pltpu.PrefetchScalarGridSpec(
            num_scalar_prefetch=0,
            grid=grid,
            in_specs=[
                pl.BlockSpec((1, th * W, Cin), lambda n, i: (n, i, 0)),
                pl.BlockSpec((Cin, Cout), lambda n, i: (0, 0)),
                pl.BlockSpec((1, Cout), lambda n, i: (0, 0)),
                pl.BlockSpec((1, tc, W, Cout), lambda n, i: (n, i, 0, 0)),
            ],
            out_specs=pl.BlockSpec((1, th, W, Cout), lambda n, i: (n, i, 0, 0)),
        ),
        compiler_params=pltpu.CompilerParams(
            dimension_semantics=("parallel", "parallel")),
    )(x, w2d, b2d, up_w)

    return jnp.transpose(out_nhwc, (0, 3, 1, 2))         # back to NCHW


# ----------------------------------------------------------------------------
# General fallback (any scale / any W): upsample materialized in NHWC, 2D tiles.
# ----------------------------------------------------------------------------
def _lateral_matmul_kernel(x_ref, w_ref, b_ref, up_ref, o_ref):
    proj = jnp.dot(x_ref[...], w_ref[...], preferred_element_type=jnp.float32)
    o_ref[...] = (proj + b_ref[...] + up_ref[...]).astype(o_ref.dtype)


def _general_path(prev, cur, weight, bias, *, tm):
    N, Cin, H, W = cur.shape
    Cout = weight.shape[0]
    Hp, Wp = prev.shape[-2:]

    # Exact integer nearest indices (matches PyTorch 'nearest').
    idx_h = (jnp.arange(H, dtype=jnp.int32) * Hp) // H
    idx_w = (jnp.arange(W, dtype=jnp.int32) * Wp) // W
    prev_nhwc = jnp.transpose(prev, (0, 2, 3, 1))        # small: (N, Hp, Wp, C)
    up = jnp.take(jnp.take(prev_nhwc, idx_h, axis=1), idx_w, axis=2)
    up_flat = up.reshape(N * H * W, Cout)                # already kernel layout

    x_flat = jnp.transpose(cur, (0, 2, 3, 1)).reshape(N * H * W, Cin)
    w2d = weight.reshape(Cout, Cin).T
    b2d = bias.reshape(1, Cout)

    M = N * H * W
    tm = min(tm, pl.cdiv(M, 8) * 8)                      # no jnp.pad; ragged OK
    grid = (pl.cdiv(M, tm),)

    out_flat = pl.pallas_call(
        _lateral_matmul_kernel,
        out_shape=jax.ShapeDtypeStruct((M, Cout), cur.dtype),
        grid_spec=pltpu.PrefetchScalarGridSpec(
            num_scalar_prefetch=0,
            grid=grid,
            in_specs=[
                pl.BlockSpec((tm, Cin), lambda i: (i, 0)),
                pl.BlockSpec((Cin, Cout), lambda i: (0, 0)),
                pl.BlockSpec((1, Cout), lambda i: (0, 0)),
                pl.BlockSpec((tm, Cout), lambda i: (i, 0)),
            ],
            out_specs=pl.BlockSpec((tm, Cout), lambda i: (i, 0)),
        ),
        compiler_params=pltpu.CompilerParams(
            dimension_semantics=("parallel",)),
    )(x_flat, w2d, b2d, up_flat)

    return out_flat.reshape(N, H, W, Cout).transpose(0, 3, 1, 2)


def lateral_connection(prev, cur, weight, bias, *, target_rows=1024, tm=512):
    """Pallas implementation of LateralConnection.forward.

    Args:
      prev  : (N, Cout, Hp, Wp)  NCHW, previous (coarser) pyramid level.
      cur   : (N, Cin,  H,  W)   NCHW, current pyramid level.
      weight: (Cout, Cin, 1, 1)  1x1 conv weight (PyTorch layout).
      bias  : (Cout,)            conv bias.
    Returns:
      (N, Cout, H, W) NCHW.
    """
    N, Cin, H, W = cur.shape
    Hp, Wp = prev.shape[-2:]
    # Fused path: integer upsample factor along H (the usual FPN 2x case) and a
    # sublane-friendly W.  Otherwise fall back to the general tiled kernel.
    if H % Hp == 0 and W % 8 == 0:
        return _fused_path(prev, cur, weight, bias, target_rows=target_rows)
    return _general_path(prev, cur, weight, bias, tm=tm)


def _reference(prev, cur, weight, bias):
    """Pure-JAX reference matching the PyTorch forward."""
    N, Cin, H, W = cur.shape
    Cout = weight.shape[0]
    Hp, Wp = prev.shape[-2:]
    idx_h = (jnp.arange(H) * Hp) // H
    idx_w = (jnp.arange(W) * Wp) // W
    up = prev[:, :, idx_h, :][:, :, :, idx_w]
    proj = jnp.einsum('nchw,oc->nohw', cur, weight.reshape(Cout, Cin)) \
        + bias.reshape(1, Cout, 1, 1)
    return proj + up


if __name__ == "__main__":
    key = jax.random.PRNGKey(0)
    k1, k2, k3, k4 = jax.random.split(key, 4)

    # --- primary (fused) case: FPN-style 2x nearest upsample -----------------
    N, Cin, Cout = 2, 4, 4
    H, W = 16, 16
    Hp, Wp = 8, 8

    cur = jax.random.normal(k1, (N, Cin, H, W), dtype=jnp.float32)
    prev = jax.random.normal(k2, (N, Cout, Hp, Wp), dtype=jnp.float32)
    weight = jax.random.normal(k3, (Cout, Cin, 1, 1), dtype=jnp.float32) * 0.1
    bias = jax.random.normal(k4, (Cout,), dtype=jnp.float32) * 0.1

    out = jax.jit(lateral_connection)(prev, cur, weight, bias)
    jax.block_until_ready(out)
    ref = _reference(prev, cur, weight, bias)
    assert out.shape == (N, Cout, H, W)
    assert jnp.allclose(out, ref, atol=1e-5, rtol=1e-5), "fused path mismatch"

    # --- fallback (general scale) case ---------------------------------------
    H2, W2, Hp2, Wp2, Cin2 = 12, 12, 5, 5, 3
    cur2 = jax.random.normal(k1, (N, Cin2, H2, W2), dtype=jnp.float32)
    prev2 = jax.random.normal(k2, (N, Cout, Hp2, Wp2), dtype=jnp.float32)
    weight2 = jax.random.normal(k3, (Cout, Cin2, 1, 1), dtype=jnp.float32) * 0.1

    out2 = jax.jit(lateral_connection)(prev2, cur2, weight2, bias)
    jax.block_until_ready(out2)
    ref2 = _reference(prev2, cur2, weight2, bias)
    assert out2.shape == (N, Cout, H2, W2)
    assert jnp.allclose(out2, ref2, atol=1e-5, rtol=1e-5), "general path mismatch"

    print("KERNEL_OK")
</pallas_src>

<mosaic_0001>
module attributes {stable_mosaic.version = 11 : i64} {
  func.func @_lateral_fused_kernel(%arg0: i32, %arg1: i32, %arg2: memref<1x256x4xf32, #tpu.memory_space<vmem>>, %arg3: memref<4x4xf32, #tpu.memory_space<vmem>>, %arg4: memref<1x4xf32, #tpu.memory_space<vmem>>, %arg5: memref<1x8x16x4xf32, #tpu.memory_space<vmem>>, %arg6: memref<1x16x16x4xf32, #tpu.memory_space<vmem>>) attributes {dimension_semantics = [#tpu.dimension_semantics<parallel>, #tpu.dimension_semantics<parallel>], iteration_bounds = array<i64: 2, 1>, scalar_prefetch = 0 : i64, scratch_operands = 0 : i64, tpu.core_type = #tpu.core_type<tc>, window_params = [{transform_indices = @transform_0, window_bounds = array<i64: 1, 256, 4>}, {pipeline_mode = #tpu.pipeline_mode<synchronous>, transform_indices = @transform_1, window_bounds = array<i64: 4, 4>}, {pipeline_mode = #tpu.pipeline_mode<synchronous>, transform_indices = @transform_2, window_bounds = array<i64: 1, 4>}, {transform_indices = @transform_3, window_bounds = array<i64: 1, 8, 16, 4>}, {transform_indices = @transform_4, window_bounds = array<i64: 1, 16, 16, 4>}]} {
    %c0 = arith.constant 0 : index
    %c0_0 = arith.constant 0 : index
    %c0_1 = arith.constant 0 : index
    %0 = vector.load %arg2[%c0, %c0_0, %c0_1] : memref<1x256x4xf32, #tpu.memory_space<vmem>>, vector<1x256x4xf32>
    %1 = vector.shape_cast %0 : vector<1x256x4xf32> to vector<256x4xf32>
    %c0_2 = arith.constant 0 : index
    %c0_3 = arith.constant 0 : index
    %2 = vector.load %arg3[%c0_2, %c0_3] : memref<4x4xf32, #tpu.memory_space<vmem>>, vector<4x4xf32>
    %cst = arith.constant dense<0.000000e+00> : vector<256x4xf32>
    %3 = tpu.matmul %1, %2, %cst {dimension_numbers = #tpu.dot_dimension_numbers<[1], [0], [0], [1], [0, 0, 1, 1], [], []>} : vector<256x4xf32>, vector<4x4xf32>, vector<256x4xf32> -> vector<256x4xf32>
    %c0_4 = arith.constant 0 : index
    %c0_5 = arith.constant 0 : index
    %4 = vector.load %arg4[%c0_4, %c0_5] : memref<1x4xf32, #tpu.memory_space<vmem>>, vector<1x4xf32>
    %5 = vector.broadcast %4 : vector<1x4xf32> to vector<256x4xf32>
    %6 = arith.addf %3, %5 : vector<256x4xf32>
    %7 = vector.shape_cast %6 : vector<256x4xf32> to vector<16x16x4xf32>
    %c0_6 = arith.constant 0 : index
    %c0_7 = arith.constant 0 : index
    %c0_8 = arith.constant 0 : index
    %c0_9 = arith.constant 0 : index
    %8 = vector.load %arg5[%c0_6, %c0_7, %c0_8, %c0_9] : memref<1x8x16x4xf32, #tpu.memory_space<vmem>>, vector<1x8x16x4xf32>
    %9 = vector.shape_cast %8 : vector<1x8x16x4xf32> to vector<8x16x4xf32>
    %10 = vector.shape_cast %9 : vector<8x16x4xf32> to vector<8x1x16x4xf32>
    %11 = vector.shape_cast %10 : vector<8x1x16x4xf32> to vector<8x1x16x4xf32>
    %12 = vector.broadcast %11 : vector<8x1x16x4xf32> to vector<8x2x16x4xf32>
    %13 = vector.shape_cast %12 : vector<8x2x16x4xf32> to vector<16x16x4xf32>
    %14 = arith.addf %7, %13 : vector<16x16x4xf32>
    %c0_10 = arith.constant 0 : index
    %c0_11 = arith.constant 0 : index
    %c0_12 = arith.constant 0 : index
    %c0_13 = arith.constant 0 : index
    %15 = vector.load %arg6[%c0_10, %c0_11, %c0_12, %c0_13] : memref<1x16x16x4xf32, #tpu.memory_space<vmem>>, vector<1x16x16x4xf32>
    %16 = vector.shape_cast %15 : vector<1x16x16x4xf32> to vector<16x16x4xf32>
    %17 = vector.shape_cast %14 : vector<16x16x4xf32> to vector<1x16x16x4xf32>
    tpu.vector_store %arg6[%c0_10, %c0_11, %c0_12, %c0_13], %17 {strides = array<i32>} : memref<1x16x16x4xf32, #tpu.memory_space<vmem>>, vector<1x16x16x4xf32>,
    return
  }
  func.func @transform_0(%arg0: i32, %arg1: i32) -> (i32, i32, i32) {
    %c0_i32 = arith.constant 0 : i32
    %c0_i32_0 = arith.constant 0 : i32
    return %arg0, %arg1, %c0_i32 : i32, i32, i32
  }
  func.func @transform_1(%arg0: i32, %arg1: i32) -> (i32, i32) {
    %c0_i32 = arith.constant 0 : i32
    %c0_i32_0 = arith.constant 0 : i32
    %c0_i32_1 = arith.constant 0 : i32
    return %c0_i32, %c0_i32_0 : i32, i32
  }
  func.func @transform_2(%arg0: i32, %arg1: i32) -> (i32, i32) {
    %c0_i32 = arith.constant 0 : i32
    %c0_i32_0 = arith.constant 0 : i32
    %c0_i32_1 = arith.constant 0 : i32
    return %c0_i32, %c0_i32_0 : i32, i32
  }
  func.func @transform_3(%arg0: i32, %arg1: i32) -> (i32, i32, i32, i32) {
    %c0_i32 = arith.constant 0 : i32
    %c0_i32_0 = arith.constant 0 : i32
    %c0_i32_1 = arith.constant 0 : i32
    return %arg0, %arg1, %c0_i32, %c0_i32_0 : i32, i32, i32, i32
  }
  func.func @transform_4(%arg0: i32, %arg1: i32) -> (i32, i32, i32, i32) {
    %c0_i32 = arith.constant 0 : i32
    %c0_i32_0 = arith.constant 0 : i32
    %c0_i32_1 = arith.constant 0 : i32
    return %arg0, %arg1, %c0_i32, %c0_i32_0 : i32, i32, i32, i32
  }
}

</mosaic_0001>

<llo_original>
// kernel: lateral_connection.1
$region0: #{lateral_connection.1}
  #allocation0 [shape = 'u32[]', space=smem, size = 0x4, offset = 0x4, fixed_abs, tag = 'smem constant byte address 0x4 - core index']
  #allocation1 [shape = 'u32[144,128]{1,0:T(1,128)}', space=vmem, size = 0x12000, scoped, tag = 'internal scratch']
  %s0 = inlined_call_operand.vmem [shape: f32[2,256,4], index: 0, kind: input, shape index: {}]
  %s1 = inlined_call_operand.vmem [shape: f32[4,4], index: 1, kind: input, shape index: {}]
  %s2 = inlined_call_operand.vmem [shape: f32[1,4], index: 2, kind: input, shape index: {}]
  %s3 = inlined_call_operand.vmem [shape: f32[2,8,16,4], index: 3, kind: input, shape index: {}]
  %s4 = inlined_call_operand.vmem [shape: f32[2,16,16,4], index: 4, kind: output, shape index: {}]
  %s5 = sld [smem:[#allocation0]]
  $region49: #{lateral_connection.1} parent=0
    _
  %s7 = ssub.s32 1, %s5
  %s8 = scalar_select 0, %s7, %s5
  loop: start=0, step=1, limit=4
  $region2: #{lateral_connection.1} parent=0 // loop_pre_header
    _
  $region3: #{lateral_connection.1} parent=0 // loop_header
    %s10 = sphi 0, %s14
    %p11 = scmp.ge.s32.totalorder %s10, 4
    %s17 = sphi 0, %s29
    %s18 = sphi 0, %s25
    %s19 = sphi 0, %s17
    %s20 = sphi 0, %s18
    %s21 = sphi 0, %s19
    %s22 = sphi 0, %s20
    %s34 = sphi 0, %s36
    %s37 = sphi 0, %s34
    %s38 = sphi 0, %s37
    %s54 = sphi 0, %s38
    %s58 = sphi 0, %s58
    %s60 = sphi 0, %s58
    %s61 = sphi 0, %s60
    %s75 = sphi 0, %s61
    %s79 = sphi 0, %s79
    %s81 = sphi 0, %s79
    %s82 = sphi 0, %s81
    %s96 = sphi 0, %s82
    %s104 = sphi 0, %s106
    %s107 = sphi 0, %s104
    %s108 = sphi 0, %s107
    %s124 = sphi 0, %s108
    %s132 = sphi 0, %s134
    %s135 = sphi 0, %s132
    %s136 = sphi 0, %s135
    %s152 = sphi 0, %s136
  $region4: #{lateral_connection.1} parent=0 // loop_header_branch
    %13 = sbr.rel (%p11) target = $region8
  $region5: #{lateral_connection.1} parent=0 // loop_body
    %s15 = ssub.s32 %s10, 1
    %s16 = ssub.s32 %s10, 2
    %s23 = sadd.s32 1, %s18
    %p24 = scmp.ge.s32.totalorder %s23, 1
    %s25 = scalar_select %p24, 0, %s23
    %s26 = sadd.s32 1, %s17
    %s27 = scalar_select %p24, %s26, %s17
    %p28 = scmp.ge.s32.totalorder %s27, 2
    %s29 = scalar_select %p28, 0, %s27
    %s30 = ssub.s32 %s17, %s29
    %s31 = ssub.s32 %s18, %s25
    %s32 = sor.u32 %s30, %s31
    %p33 = scmp.eq.s32.totalorder %s32, 0
    %s35 = sadd.s32 %s34, 1
    %s36 = scalar_select %p33, %s34, %s35
    %p39 = pneg %p33
    %p40 = scmp.eq.s32.totalorder %s10, 1
    %p41 = por %p39, %p40
    %p42 = scmp.ne.s32.totalorder %s34, %s37
    %p43 = scmp.eq.s32.totalorder %s10, 0
    %p44 = por %p42, %p43
    %p45 = scmp.ne.s32.totalorder %s34, %s37
    %p46 = scmp.eq.s32.totalorder %s15, 1
    %p47 = por %p45, %p46
    %p48 = scmp.ne.s32.totalorder %s37, %s38
    %p49 = scmp.eq.s32.totalorder %s15, 0
    %p50 = por %p48, %p49
    %p51 = scmp.ne.s32.totalorder %s37, %s38
    %p52 = scmp.eq.s32.totalorder %s16, 1
    %p53 = por %p51, %p52
    %p55 = scmp.ne.s32.totalorder %s38, %s54
    %p56 = scmp.eq.s32.totalorder %s16, 0
    %p57 = por %p55, %p56
    %s59 = sadd.s32 %s58, 1
    %p62 = scmp.eq.s32.totalorder %s10, 1
    %p63 = scmp.ne.s32.totalorder %s58, %s60
    %p64 = scmp.eq.s32.totalorder %s10, 0
    %p65 = por %p63, %p64
    %p66 = scmp.ne.s32.totalorder %s58, %s60
    %p67 = scmp.eq.s32.totalorder %s15, 1
    %p68 = por %p66, %p67
    %p69 = scmp.ne.s32.totalorder %s60, %s61
    %p70 = scmp.eq.s32.totalorder %s15, 0
    %p71 = por %p69, %p70
    %p72 = scmp.ne.s32.totalorder %s60, %s61
    %p73 = scmp.eq.s32.totalorder %s16, 1
    %p74 = por %p72, %p73
    %p76 = scmp.ne.s32.totalorder %s61, %s75
    %p77 = scmp.eq.s32.totalorder %s16, 0
    %p78 = por %p76, %p77
    %s80 = sadd.s32 %s79, 1
    %p83 = scmp.eq.s32.totalorder %s10, 1
    %p84 = scmp.ne.s32.totalorder %s79, %s81
    %p85 = scmp.eq.s32.totalorder %s10, 0
    %p86 = por %p84, %p85
    %p87 = scmp.ne.s32.totalorder %s79, %s81
    %p88 = scmp.eq.s32.totalorder %s15, 1
    %p89 = por %p87, %p88
    %p90 = scmp.ne.s32.totalorder %s81, %s82
    %p91 = scmp.eq.s32.totalorder %s15, 0
    %p92 = por %p90, %p91
    %p93 = scmp.ne.s32.totalorder %s81, %s82
    %p94 = scmp.eq.s32.totalorder %s16, 1
    %p95 = por %p93, %p94
    %p97 = scmp.ne.s32.totalorder %s82, %s96
    %p98 = scmp.eq.s32.totalorder %s16, 0
    %p99 = por %p97, %p98
    %s100 = ssub.s32 %s17, %s29
    %s101 = ssub.s32 %s18, %s25
    %s102 = sor.u32 %s100, %s101
    %p103 = scmp.eq.s32.totalorder %s102, 0
    %s105 = sadd.s32 %s104, 1
    %s106 = scalar_select %p103, %s104, %s105
    %p109 = pneg %p103
    %p110 = scmp.eq.s32.totalorder %s10, 1
    %p111 = por %p109, %p110
    %p112 = scmp.ne.s32.totalorder %s104, %s107
    %p113 = scmp.eq.s32.totalorder %s10, 0
    %p114 = por %p112, %p113
    %p115 = scmp.ne.s32.totalorder %s104, %s107
    %p116 = scmp.eq.s32.totalorder %s15, 1
    %p117 = por %p115, %p116
    %p118 = scmp.ne.s32.totalorder %s107, %s108
    %p119 = scmp.eq.s32.totalorder %s15, 0
    %p120 = por %p118, %p119
    %p121 = scmp.ne.s32.totalorder %s107, %s108
    %p122 = scmp.eq.s32.totalorder %s16, 1
    %p123 = por %p121, %p122
    %p125 = scmp.ne.s32.totalorder %s108, %s124
    %p126 = scmp.eq.s32.totalorder %s16, 0
    %p127 = por %p125, %p126
    %s128 = ssub.s32 %s17, %s29
    %s129 = ssub.s32 %s18, %s25
    %s130 = sor.u32 %s128, %s129
    %p131 = scmp.eq.s32.totalorder %s130, 0
    %s133 = sadd.s32 %s132, 1
    %s134 = scalar_select %p131, %s132, %s133
    %p137 = pneg %p131
    %p138 = scmp.eq.s32.totalorder %s10, 1
    %p139 = por %p137, %p138
    %p140 = scmp.ne.s32.totalorder %s132, %s135
    %p141 = scmp.eq.s32.totalorder %s10, 0
    %p142 = por %p140, %p141
    %p143 = scmp.ne.s32.totalorder %s132, %s135
    %p144 = scmp.eq.s32.totalorder %s15, 1
    %p145 = por %p143, %p144
    %p146 = scmp.ne.s32.totalorder %s135, %s136
    %p147 = scmp.eq.s32.totalorder %s15, 0
    %p148 = por %p146, %p147
    %p149 = scmp.ne.s32.totalorder %s135, %s136
    %p150 = scmp.eq.s32.totalorder %s16, 1
    %p151 = por %p149, %p150
    %p153 = scmp.ne.s32.totalorder %s136, %s152
    %p154 = scmp.eq.s32.totalorder %s16, 0
    %p155 = por %p153, %p154
    %p156 = scmp.le.s32.totalorder 1, %s10
    %p157 = scmp.lt.s32.totalorder %s10, 3
    %p158 = pnand %p156, %p157
    %p159 = pneg %p158
    // Predicated region
    $region9: #{lateral_connection.1} parent=5 // pred_check
      _
    $region10: #{lateral_connection.1} parent=5 // pred_check_branch
      %161 = sbr.rel (%p158) target = $region12
    $region11: #{lateral_connection.1} parent=5 // pred_region
      %s162 = ssub.s32 %s10, 1
      // Predicated region
      $region13: #{lateral_connection.1} parent=11 // pred_check
        %p163 = pneg %p71
      $region14: #{lateral_connection.1} parent=11 // pred_check_branch
        %165 = sbr.rel (%p163) target = $region16
      $region15: #{lateral_connection.1} parent=11 // pred_region
        _
      $region16: #{lateral_connection.1} parent=11 // pred_fallthru
        _
      // Predicated region
      $region17: #{lateral_connection.1} parent=11 // pred_check
        %p166 = pneg %p92
      $region18: #{lateral_connection.1} parent=11 // pred_check_branch
        %168 = sbr.rel (%p166) target = $region20
      $region19: #{lateral_connection.1} parent=11 // pred_region
        _
      $region20: #{lateral_connection.1} parent=11 // pred_fallthru
        _
    $region12: #{lateral_connection.1} parent=5 // pred_fallthru
      _
    %p169 = scmp.lt.s32.totalorder %s10, 2
    // Predicated region
    $region21: #{lateral_connection.1} parent=5 // pred_check
      %p170 = pneg %p169
    $region22: #{lateral_connection.1} parent=5 // pred_check_branch
      %172 = sbr.rel (%p170) target = $region24
    $region23: #{lateral_connection.1} parent=5 // pred_region
      // Predicated region
      $region25: #{lateral_connection.1} parent=23 // pred_check
        %p173 = pneg %p44
      $region26: #{lateral_connection.1} parent=23 // pred_check_branch
        %175 = sbr.rel (%p173) target = $region28
      $region27: #{lateral_connection.1} parent=23 // pred_region
        %s176 = smul.u32 32, %s18
        %p177 = scmp.lt.s32.totalorder %s17, 1
        %s178 = scalar_select %p177, %s17, 1
        %p179 = scmp.lt.s32.totalorder %s176, 31
        %s180 = scalar_select %p179, %s176, 31
        %s181 = smul.addr %s178, 32
        %s182 = sadd.s32 %s180, %s181
        %s183 = smul.addr %s182, 8
        %s184 = scalar_lea.vmem %s0, %s183
        %s185 = smul.u32 32, %s18
      $region28: #{lateral_connection.1} parent=23 // pred_fallthru
        _
      // Predicated region
      $region29: #{lateral_connection.1} parent=23 // pred_check
        %p186 = pneg %p114
      $region30: #{lateral_connection.1} parent=23 // pred_check_branch
        %188 = sbr.rel (%p186) target = $region32
      $region31: #{lateral_connection.1} parent=23 // pred_region
        %s189 = smul.u32 8, %s18
        %p190 = scmp.lt.s32.totalorder %s17, 1
        %s191 = scalar_select %p190, %s17, 1
        %p192 = scmp.lt.s32.totalorder %s189, 7
        %s193 = scalar_select %p192, %s189, 7
        %s194 = smul.addr %s193, 2
        %s195 = smul.addr %s191, 16
        %s196 = sadd.s32 %s194, %s195
        %s197 = smul.addr %s196, 8
        %s198 = scalar_lea.vmem %s3, %s197
        %s199 = smul.u32 8, %s18
      $region32: #{lateral_connection.1} parent=23 // pred_fallthru
        _
    $region24: #{lateral_connection.1} parent=5 // pred_fallthru
      _
    %p200 = scmp.le.s32.totalorder 1, %s10
    %p201 = scmp.lt.s32.totalorder %s10, 3
    %p202 = pnand %p200, %p201
    %p203 = pneg %p202
    // Predicated region
    $region33: #{lateral_connection.1} parent=5 // pred_check
      _
    $region34: #{lateral_connection.1} parent=5 // pred_check_branch
      %205 = sbr.rel (%p202) target = $region36
    $region35: #{lateral_connection.1} parent=5 // pred_region
      %s206 = ssub.s32 %s10, 1
      %s207 = smul.u32 32, %s20
      %p208 = scmp.lt.s32.totalorder %s19, 1
      %s209 = scalar_select %p208, %s19, 1
      %p210 = scmp.lt.s32.totalorder %s207, 31
      %s211 = scalar_select %p210, %s207, 31
      %s212 = smul.addr %s209, 32
      %s213 = sadd.s32 %s211, %s212
      %s214 = smul.addr %s213, 8
      %s215 = scalar_lea.vmem %s0, %s214
      %p216 = pneg %p50
      %p217 = pneg %p47
      %p218 = pneg %p71
      %p219 = pneg %p68
      %p220 = pneg %p92
      %p221 = pneg %p89
      %s222 = smul.u32 8, %s20
      %p223 = scmp.lt.s32.totalorder %s19, 1
      %s224 = scalar_select %p223, %s19, 1
      %p225 = scmp.lt.s32.totalorder %s222, 7
      %s226 = scalar_select %p225, %s222, 7
      %s227 = smul.addr %s226, 2
      %s228 = smul.addr %s224, 16
      %s229 = sadd.s32 %s227, %s228
      %s230 = smul.addr %s229, 8
      %s231 = scalar_lea.vmem %s3, %s230
      %p232 = pneg %p120
      %p233 = pneg %p117
      %p234 = pneg %p148
      %p235 = pneg %p145
      %s236 = smul.u32 16, %s20
      %p237 = scmp.lt.s32.totalorder %s19, 1
      %s238 = scalar_select %p237, %s19, 1
      %p239 = scmp.lt.s32.totalorder %s236, 15
      %s240 = scalar_select %p239, %s236, 15
      %s241 = smul.addr %s240, 2
      %s242 = smul.addr %s238, 32
      %s243 = sadd.s32 %s241, %s242
      %s244 = smul.addr %s243, 8
      %s245 = scalar_lea.vmem %s4, %s244
      %s246 = smul.u32 32, %s20
      %p247 = scmp.lt.s32.totalorder %s19, 1
      %s248 = scalar_select %p247, %s19, 1
      %p249 = scmp.lt.s32.totalorder %s246, 31
      %s250 = scalar_select %p249, %s246, 31
      %s251 = smul.addr %s248, 32
      %s252 = sadd.s32 %s250, %s251
      %s253 = smul.addr %s252, 8
      %s254 = scalar_lea.vmem %s0, %s253
      %s255 = smul.u32 32, %s20
      %s256 = smul.u32 8, %s20
      %p257 = scmp.lt.s32.totalorder %s19, 1
      %s258 = scalar_select %p257, %s19, 1
      %p259 = scmp.lt.s32.totalorder %s256, 7
      %s260 = scalar_select %p259, %s256, 7
      %s261 = smul.addr %s260, 2
      %s262 = smul.addr %s258, 16
      %s263 = sadd.s32 %s261, %s262
      %s264 = smul.addr %s263, 8
      %s265 = scalar_lea.vmem %s3, %s264
      %s266 = smul.u32 8, %s20
      %s267 = smul.u32 16, %s20
      %p268 = scmp.lt.s32.totalorder %s19, 1
      %s269 = scalar_select %p268, %s19, 1
      %p270 = scmp.lt.s32.totalorder %s267, 15
      %s271 = scalar_select %p270, %s267, 15
      %s272 = smul.addr %s271, 2
      %s273 = smul.addr %s269, 32
      %s274 = sadd.s32 %s272, %s273
      %s275 = smul.addr %s274, 8
      %s276 = scalar_lea.vmem %s4, %s275
      %s277 = smul.u32 16, %s20
      %v278 = vld [vmem:[%s254] sm:$0xff]
      %v279 = vld [vmem:[%s254 + $0x8] sm:$0xff]
      %v280 = vld [vmem:[%s254 + $0x10] sm:$0xff]
      %v281 = vld [vmem:[%s254 + $0x18] sm:$0xff]
      %v282 = vld [vmem:[%s254 + $0x20] sm:$0xff]
      %v283 = vld [vmem:[%s254 + $0x28] sm:$0xff]
      %v284 = vld [vmem:[%s254 + $0x30] sm:$0xff]
      %v285 = vld [vmem:[%s254 + $0x38] sm:$0xff]
      %v286 = vld [vmem:[%s254 + $0x40] sm:$0xff]
      %v287 = vld [vmem:[%s254 + $0x48] sm:$0xff]
      %v288 = vld [vmem:[%s254 + $0x50] sm:$0xff]
      %v289 = vld [vmem:[%s254 + $0x58] sm:$0xff]
      %v290 = vld [vmem:[%s254 + $0x60] sm:$0xff]
      %v291 = vld [vmem:[%s254 + $0x68] sm:$0xff]
      %v292 = vld [vmem:[%s254 + $0x70] sm:$0xff]
      %v293 = vld [vmem:[%s254 + $0x78] sm:$0xff]
      %v294 = vld [vmem:[%s254 + $0x80] sm:$0xff]
      %v295 = vld [vmem:[%s254 + $0x88] sm:$0xff]
      %v296 = vld [vmem:[%s254 + $0x90] sm:$0xff]
      %v297 = vld [vmem:[%s254 + $0x98] sm:$0xff]
      %v298 = vld [vmem:[%s254 + $0xa0] sm:$0xff]
      %v299 = vld [vmem:[%s254 + $0xa8] sm:$0xff]
      %v300 = vld [vmem:[%s254 + $0xb0] sm:$0xff]
      %v301 = vld [vmem:[%s254 + $0xb8] sm:$0xff]
      %v302 = vld [vmem:[%s254 + $0xc0] sm:$0xff]
      %v303 = vld [vmem:[%s254 + $0xc8] sm:$0xff]
      %v304 = vld [vmem:[%s254 + $0xd0] sm:$0xff]
      %v305 = vld [vmem:[%s254 + $0xd8] sm:$0xff]
      %v306 = vld [vmem:[%s254 + $0xe0] sm:$0xff]
      %v307 = vld [vmem:[%s254 + $0xe8] sm:$0xff]
      %v308 = vld [vmem:[%s254 + $0xf0] sm:$0xff]
      %v309 = vld [vmem:[%s254 + $0xf8] sm:$0xff]
      %v310 = vld [vmem:[%s1] sm:$0xf]
      %v311 = vld [vmem:[%s2] sm:$0x1]
      %v313 = vlaneseq
      %v314 = vshrl.u32 %v313, 7
      %v315 = vsub.s32 0, %v314
      %v316 = vrot.slane %v311, %v315
      %vm318 = vcmask 31744
      %v320 = vsel %vm318, %v278, 0
      %v323 = vsel %vm318, %v279, 0
      %v326 = vsel %vm318, %v280, 0
      %v329 = vsel %vm318, %v281, 0
      %v332 = vsel %vm318, %v282, 0
      %v335 = vsel %vm318, %v283, 0
      %v338 = vsel %vm318, %v284, 0
      %v341 = vsel %vm318, %v285, 0
      %v344 = vsel %vm318, %v286, 0
      %v347 = vsel %vm318, %v287, 0
      %v350 = vsel %vm318, %v288, 0
      %v353 = vsel %vm318, %v289, 0
      %v356 = vsel %vm318, %v290, 0
      %v359 = vsel %vm318, %v291, 0
      %v362 = vsel %vm318, %v292, 0
      %v365 = vsel %vm318, %v293, 0
      %v368 = vsel %vm318, %v294, 0
      %v371 = vsel %vm318, %v295, 0
      %v374 = vsel %vm318, %v296, 0
      %v377 = vsel %vm318, %v297, 0
      %v380 = vsel %vm318, %v298, 0
      %v383 = vsel %vm318, %v299, 0
      %v386 = vsel %vm318, %v300, 0
      %v389 = vsel %vm318, %v301, 0
      %v392 = vsel %vm318, %v302, 0
      %v395 = vsel %vm318, %v303, 0
      %v398 = vsel %vm318, %v304, 0
      %v401 = vsel %vm318, %v305, 0
      %v404 = vsel %vm318, %v306, 0
      %v407 = vsel %vm318, %v307, 0
      %v410 = vsel %vm318, %v308, 0
      %v413 = vsel %vm318, %v309, 0
      %vm415 = vcmask 1043456
      %v417 = vsel %vm415, %v310, 0
      %419 = vmatprep.subr.mxu0 0.0
      %420 = vmatpush1.msra.mxu0 %v417
      %421 = vmatprep.subr.mxu0 0.0
      %422 = vmatpush1.msra.mxu0 0.0
      %423 = vmatprep.subr.mxu0 0.0
      %424 = vmatpush1.msra.mxu0 0.0
      %425 = vmatprep.subr.mxu0 0.0
      %426 = vmatpush1.msra.mxu0 0.0
      %427 = vmatprep.subr.mxu0 0.0
      %428 = vmatpush1.msra.mxu0 0.0
      %429 = vmatprep.subr.mxu0 0.0
      %430 = vmatpush1.msra.mxu0 0.0
      %431 = vmatprep.subr.mxu0 0.0
      %432 = vmatpush1.msra.mxu0 0.0
      %433 = vmatprep.subr.mxu0 0.0
      %434 = vmatpush1.msra.mxu0 0.0
      %435 = vmatprep.subr.mxu0 0.0
      %436 = vmatpush1.msra.mxu0 0.0
      %437 = vmatprep.subr.mxu0 0.0
      %438 = vmatpush1.msra.mxu0 0.0
      %439 = vmatprep.subr.mxu0 0.0
      %440 = vmatpush1.msra.mxu0 0.0
      %441 = vmatprep.subr.mxu0 0.0
      %442 = vmatpush1.msra.mxu0 0.0
      %443 = vmatprep.subr.mxu0 0.0
      %444 = vmatpush1.msra.mxu0 0.0
      %445 = vmatprep.subr.mxu0 0.0
      %446 = vmatpush1.msra.mxu0 0.0
      %447 = vmatprep.subr.mxu0 0.0
      %448 = vmatpush1.msra.mxu0 0.0
      %449 = vmatprep.subr.mxu0 0.0
      %450 = vmatpush1.msra.mxu0 0.0
      %451 = vmatprep.subr.mxu0 0.0
      %452 = vmatpush1.msra.mxu0 0.0
      %453 = vmatprep.subr.mxu0 0.0
      %454 = vmatpush1.msra.mxu0 0.0
      %455 = vmatprep.subr.mxu0 0.0
      %456 = vmatpush1.msra.mxu0 0.0
      %457 = vmatprep.subr.mxu0 0.0
      %458 = vmatpush1.msra.mxu0 0.0
      %459 = vmatprep.subr.mxu0 0.0
      %460 = vmatpush1.msra.mxu0 0.0
      %461 = vmatprep.subr.mxu0 0.0
      %462 = vmatpush1.msra.mxu0 0.0
      %463 = vmatprep.subr.mxu0 0.0
      %464 = vmatpush1.msra.mxu0 0.0
      %465 = vmatprep.subr.mxu0 0.0
      %466 = vmatpush1.msra.mxu0 0.0
      %467 = vmatprep.subr.mxu0 0.0
      %468 = vmatpush1.msra.mxu0 0.0
      %469 = vmatprep.subr.mxu0 0.0
      %470 = vmatpush1.msra.mxu0 0.0
      %471 = vmatprep.subr.mxu0 0.0
      %472 = vmatpush1.msra.mxu0 0.0
      %473 = vmatprep.subr.mxu0 0.0
      %474 = vmatpush1.msra.mxu0 0.0
      %475 = vmatprep.subr.mxu0 0.0
      %476 = vmatpush1.msra.mxu0 0.0
      %477 = vmatprep.subr.mxu0 0.0
      %478 = vmatpush1.msra.mxu0 0.0
      %479 = vmatprep.subr.mxu0 0.0
      %480 = vmatpush1.msra.mxu0 0.0
      %481 = vmatprep.subr.mxu0 0.0
      %482 = vmatpush1.msra.mxu0 0.0
      %483 = vmatprep.mubr.f32.mxu0 0.0
      %484 = vmatmul.mubr.f32.gmra.mrb[0].mxu0 %v320
      %v485 = vpop.f32.mrb[0].mxu0
      %v486 = vadd.f32 %v316, %v485
      %v487 = vpop.f32.mrb[0].mxu0
      %488 = vmatprep.mubr.f32.mxu0 0.0
      %489 = vmatmul.mubr.f32.gmra.mrb[0].mxu0 %v323
      %v490 = vpop.f32.mrb[0].mxu0
      %v491 = vadd.f32 %v316, %v490
      %v492 = vpop.f32.mrb[0].mxu0
      %493 = vmatprep.mubr.f32.mxu0 0.0
      %494 = vmatmul.mubr.f32.gmra.mrb[0].mxu0 %v326
      %v495 = vpop.f32.mrb[0].mxu0
      %v496 = vadd.f32 %v316, %v495
      %v497 = vpop.f32.mrb[0].mxu0
      %498 = vmatprep.mubr.f32.mxu0 0.0
      %499 = vmatmul.mubr.f32.gmra.mrb[0].mxu0 %v329
      %v500 = vpop.f32.mrb[0].mxu0
      %v501 = vadd.f32 %v316, %v500
      %v502 = vpop.f32.mrb[0].mxu0
      %503 = vmatprep.mubr.f32.mxu0 0.0
      %504 = vmatmul.mubr.f32.gmra.mrb[0].mxu0 %v332
      %v505 = vpop.f32.mrb[0].mxu0
      %v506 = vadd.f32 %v316, %v505
      %v507 = vpop.f32.mrb[0].mxu0
      %508 = vmatprep.mubr.f32.mxu0 0.0
      %509 = vmatmul.mubr.f32.gmra.mrb[0].mxu0 %v335
      %v510 = vpop.f32.mrb[0].mxu0
      %v511 = vadd.f32 %v316, %v510
      %v512 = vpop.f32.mrb[0].mxu0
      %513 = vmatprep.mubr.f32.mxu0 0.0
      %514 = vmatmul.mubr.f32.gmra.mrb[0].mxu0 %v338
      %v515 = vpop.f32.mrb[0].mxu0
      %v516 = vadd.f32 %v316, %v515
      %v517 = vpop.f32.mrb[0].mxu0
      %518 = vmatprep.mubr.f32.mxu0 0.0
      %519 = vmatmul.mubr.f32.gmra.mrb[0].mxu0 %v341
      %v520 = vpop.f32.mrb[0].mxu0
      %v521 = vadd.f32 %v316, %v520
      %v522 = vpop.f32.mrb[0].mxu0
      %523 = vmatprep.mubr.f32.mxu0 0.0
      %524 = vmatmul.mubr.f32.gmra.mrb[0].mxu0 %v344
      %v525 = vpop.f32.mrb[0].mxu0
      %v526 = vadd.f32 %v316, %v525
      %v527 = vpop.f32.mrb[0].mxu0
      %528 = vmatprep.mubr.f32.mxu0 0.0
      %529 = vmatmul.mubr.f32.gmra.mrb[0].mxu0 %v347
      %v530 = vpop.f32.mrb[0].mxu0
      %v531 = vadd.f32 %v316, %v530
      %v532 = vpop.f32.mrb[0].mxu0
      %533 = vmatprep.mubr.f32.mxu0 0.0
      %534 = vmatmul.mubr.f32.gmra.mrb[0].mxu0 %v350
      %v535 = vpop.f32.mrb[0].mxu0
      %v536 = vadd.f32 %v316, %v535
      %v537 = vpop.f32.mrb[0].mxu0
      %538 = vmatprep.mubr.f32.mxu0 0.0
      %539 = vmatmul.mubr.f32.gmra.mrb[0].mxu0 %v353
      %v540 = vpop.f32.mrb[0].mxu0
      %v541 = vadd.f32 %v316, %v540
      %v542 = vpop.f32.mrb[0].mxu0
      %543 = vmatprep.mubr.f32.mxu0 0.0
      %544 = vmatmul.mubr.f32.gmra.mrb[0].mxu0 %v356
      %v545 = vpop.f32.mrb[0].mxu0
      %v546 = vadd.f32 %v316, %v545
      %v547 = vpop.f32.mrb[0].mxu0
      %548 = vmatprep.mubr.f32.mxu0 0.0
      %549 = vmatmul.mubr.f32.gmra.mrb[0].mxu0 %v359
      %v550 = vpop.f32.mrb[0].mxu0
      %v551 = vadd.f32 %v316, %v550
      %v552 = vpop.f32.mrb[0].mxu0
      %553 = vmatprep.mubr.f32.mxu0 0.0
      %554 = vmatmul.mubr.f32.gmra.mrb[0].mxu0 %v362
      %v555 = vpop.f32.mrb[0].mxu0
      %v556 = vadd.f32 %v316, %v555
      %v557 = vpop.f32.mrb[0].mxu0
      %558 = vmatprep.mubr.f32.mxu0 0.0
      %559 = vmatmul.mubr.f32.gmra.mrb[0].mxu0 %v365
      %v560 = vpop.f32.mrb[0].mxu0
      %v561 = vadd.f32 %v316, %v560
      %v562 = vpop.f32.mrb[0].mxu0
      %563 = vmatprep.mubr.f32.mxu0 0.0
      %564 = vmatmul.mubr.f32.gmra.mrb[0].mxu0 %v368
      %v565 = vpop.f32.mrb[0].mxu0
      %v566 = vadd.f32 %v316, %v565
      %v567 = vpop.f32.mrb[0].mxu0
      %568 = vmatprep.mubr.f32.mxu0 0.0
      %569 = vmatmul.mubr.f32.gmra.mrb[0].mxu0 %v371
      %v570 = vpop.f32.mrb[0].mxu0
      %v571 = vadd.f32 %v316, %v570
      %v572 = vpop.f32.mrb[0].mxu0
      %573 = vmatprep.mubr.f32.mxu0 0.0
      %574 = vmatmul.mubr.f32.gmra.mrb[0].mxu0 %v374
      %v575 = vpop.f32.mrb[0].mxu0
      %v576 = vadd.f32 %v316, %v575
      %v577 = vpop.f32.mrb[0].mxu0
      %578 = vmatprep.mubr.f32.mxu0 0.0
      %579 = vmatmul.mubr.f32.gmra.mrb[0].mxu0 %v377
      %v580 = vpop.f32.mrb[0].mxu0
      %v581 = vadd.f32 %v316, %v580
      %v582 = vpop.f32.mrb[0].mxu0
      %583 = vmatprep.mubr.f32.mxu0 0.0
      %584 = vmatmul.mubr.f32.gmra.mrb[0].mxu0 %v380
      %v585 = vpop.f32.mrb[0].mxu0
      %v586 = vadd.f32 %v316, %v585
      %v587 = vpop.f32.mrb[0].mxu0
      %588 = vmatprep.mubr.f32.mxu0 0.0
      %589 = vmatmul.mubr.f32.gmra.mrb[0].mxu0 %v383
      %v590 = vpop.f32.mrb[0].mxu0
      %v591 = vadd.f32 %v316, %v590
      %v592 = vpop.f32.mrb[0].mxu0
      %593 = vmatprep.mubr.f32.mxu0 0.0
      %594 = vmatmul.mubr.f32.gmra.mrb[0].mxu0 %v386
      %v595 = vpop.f32.mrb[0].mxu0
      %v596 = vadd.f32 %v316, %v595
      %v597 = vpop.f32.mrb[0].mxu0
      %598 = vmatprep.mubr.f32.mxu0 0.0
      %599 = vmatmul.mubr.f32.gmra.mrb[0].mxu0 %v389
      %v600 = vpop.f32.mrb[0].mxu0
      %v601 = vadd.f32 %v316, %v600
      %v602 = vpop.f32.mrb[0].mxu0
      %603 = vmatprep.mubr.f32.mxu0 0.0
      %604 = vmatmul.mubr.f32.gmra.mrb[0].mxu0 %v392
      %v605 = vpop.f32.mrb[0].mxu0
      %v606 = vadd.f32 %v316, %v605
      %v607 = vpop.f32.mrb[0].mxu0
      %608 = vmatprep.mubr.f32.mxu0 0.0
      %609 = vmatmul.mubr.f32.gmra.mrb[0].mxu0 %v395
      %v610 = vpop.f32.mrb[0].mxu0
      %v611 = vadd.f32 %v316, %v610
      %v612 = vpop.f32.mrb[0].mxu0
      %613 = vmatprep.mubr.f32.mxu0 0.0
      %614 = vmatmul.mubr.f32.gmra.mrb[0].mxu0 %v398
      %v615 = vpop.f32.mrb[0].mxu0
      %v616 = vadd.f32 %v316, %v615
      %v617 = vpop.f32.mrb[0].mxu0
      %618 = vmatprep.mubr.f32.mxu0 0.0
      %619 = vmatmul.mubr.f32.gmra.mrb[0].mxu0 %v401
      %v620 = vpop.f32.mrb[0].mxu0
      %v621 = vadd.f32 %v316, %v620
      %v622 = vpop.f32.mrb[0].mxu0
      %623 = vmatprep.mubr.f32.mxu0 0.0
      %624 = vmatmul.mubr.f32.gmra.mrb[0].mxu0 %v404
      %v625 = vpop.f32.mrb[0].mxu0
      %v626 = vadd.f32 %v316, %v625
      %v627 = vpop.f32.mrb[0].mxu0
      %628 = vmatprep.mubr.f32.mxu0 0.0
      %629 = vmatmul.mubr.f32.gmra.mrb[0].mxu0 %v407
      %v630 = vpop.f32.mrb[0].mxu0
      %v631 = vadd.f32 %v316, %v630
      %v632 = vpop.f32.mrb[0].mxu0
      %633 = vmatprep.mubr.f32.mxu0 0.0
      %634 = vmatmul.mubr.f32.gmra.mrb[0].mxu0 %v410
      %v635 = vpop.f32.mrb[0].mxu0
      %v636 = vadd.f32 %v316, %v635
      %v637 = vpop.f32.mrb[0].mxu0
      %638 = vmatprep.mubr.f32.mxu0 0.0
      %639 = vmatmul.mubr.f32.gmra.mrb[0].mxu0 %v413
      %v640 = vpop.f32.mrb[0].mxu0
      %v641 = vadd.f32 %v316, %v640
      %v642 = vpop.f32.mrb[0].mxu0
      %643 = vdwg.mxu0
      %v644 = vld [vmem:[%s265] sm:$0xff]
      %v645 = vld [vmem:[%s265 + $0x8] sm:$0xff]
      %v646 = vld [vmem:[%s265 + $0x10] sm:$0xff]
      %v647 = vld [vmem:[%s265 + $0x18] sm:$0xff]
      %v648 = vld [vmem:[%s265 + $0x20] sm:$0xff]
      %v649 = vld [vmem:[%s265 + $0x28] sm:$0xff]
      %v650 = vld [vmem:[%s265 + $0x30] sm:$0xff]
      %v651 = vld [vmem:[%s265 + $0x38] sm:$0xff]
      %v652 = vld [vmem:[%s265 + $0x40] sm:$0xff]
      %v653 = vld [vmem:[%s265 + $0x48] sm:$0xff]
      %v654 = vld [vmem:[%s265 + $0x50] sm:$0xff]
      %v655 = vld [vmem:[%s265 + $0x58] sm:$0xff]
      %v656 = vld [vmem:[%s265 + $0x60] sm:$0xff]
      %v657 = vld [vmem:[%s265 + $0x68] sm:$0xff]
      %v658 = vld [vmem:[%s265 + $0x70] sm:$0xff]
      %v659 = vld [vmem:[%s265 + $0x78] sm:$0xff]
      %v660 = vadd.f32 %v486, %v644
      %v661 = vadd.f32 %v491, %v645
      %v662 = vadd.f32 %v496, %v644
      %v663 = vadd.f32 %v501, %v645
      %v664 = vadd.f32 %v506, %v646
      %v665 = vadd.f32 %v511, %v647
      %v666 = vadd.f32 %v516, %v646
      %v667 = vadd.f32 %v521, %v647
      %v668 = vadd.f32 %v526, %v648
      %v669 = vadd.f32 %v531, %v649
      %v670 = vadd.f32 %v536, %v648
      %v671 = vadd.f32 %v541, %v649
      %v672 = vadd.f32 %v546, %v650
      %v673 = vadd.f32 %v551, %v651
      %v674 = vadd.f32 %v556, %v650
      %v675 = vadd.f32 %v561, %v651
      %v676 = vadd.f32 %v566, %v652
      %v677 = vadd.f32 %v571, %v653
      %v678 = vadd.f32 %v576, %v652
      %v679 = vadd.f32 %v581, %v653
      %v680 = vadd.f32 %v586, %v654
      %v681 = vadd.f32 %v591, %v655
      %v682 = vadd.f32 %v596, %v654
      %v683 = vadd.f32 %v601, %v655
      %v684 = vadd.f32 %v606, %v656
      %v685 = vadd.f32 %v611, %v657
      %v686 = vadd.f32 %v616, %v656
      %v687 = vadd.f32 %v621, %v657
      %v688 = vadd.f32 %v626, %v658
      %v689 = vadd.f32 %v631, %v659
      %v690 = vadd.f32 %v636, %v658
      %v691 = vadd.f32 %v641, %v659
      %692 = vst.msk [vmem:[%s276] sm:$0xff] %vm318, %v660
      %693 = vst.msk [vmem:[%s276 + $0x8] sm:$0xff] %vm318, %v661
      %694 = vst.msk [vmem:[%s276 + $0x10] sm:$0xff] %vm318, %v662
      %695 = vst.msk [vmem:[%s276 + $0x18] sm:$0xff] %vm318, %v663
      %696 = vst.msk [vmem:[%s276 + $0x20] sm:$0xff] %vm318, %v664
      %697 = vst.msk [vmem:[%s276 + $0x28] sm:$0xff] %vm318, %v665
      %698 = vst.msk [vmem:[%s276 + $0x30] sm:$0xff] %vm318, %v666
      %699 = vst.msk [vmem:[%s276 + $0x38] sm:$0xff] %vm318, %v667
      %700 = vst.msk [vmem:[%s276 + $0x40] sm:$0xff] %vm318, %v668
      %701 = vst.msk [vmem:[%s276 + $0x48] sm:$0xff] %vm318, %v669
      %702 = vst.msk [vmem:[%s276 + $0x50] sm:$0xff] %vm318, %v670
      %703 = vst.msk [vmem:[%s276 + $0x58] sm:$0xff] %vm318, %v671
      %704 = vst.msk [vmem:[%s276 + $0x60] sm:$0xff] %vm318, %v672
      %705 = vst.msk [vmem:[%s276 + $0x68] sm:$0xff] %vm318, %v673
      %706 = vst.msk [vmem:[%s276 + $0x70] sm:$0xff] %vm318, %v674
      %707 = vst.msk [vmem:[%s276 + $0x78] sm:$0xff] %vm318, %v675
      %708 = vst.msk [vmem:[%s276 + $0x80] sm:$0xff] %vm318, %v676
      %709 = vst.msk [vmem:[%s276 + $0x88] sm:$0xff] %vm318, %v677
      %710 = vst.msk [vmem:[%s276 + $0x90] sm:$0xff] %vm318, %v678
      %711 = vst.msk [vmem:[%s276 + $0x98] sm:$0xff] %vm318, %v679
      %712 = vst.msk [vmem:[%s276 + $0xa0] sm:$0xff] %vm318, %v680
      %713 = vst.msk [vmem:[%s276 + $0xa8] sm:$0xff] %vm318, %v681
      %714 = vst.msk [vmem:[%s276 + $0xb0] sm:$0xff] %vm318, %v682
      %715 = vst.msk [vmem:[%s276 + $0xb8] sm:$0xff] %vm318, %v683
      %716 = vst.msk [vmem:[%s276 + $0xc0] sm:$0xff] %vm318, %v684
      %717 = vst.msk [vmem:[%s276 + $0xc8] sm:$0xff] %vm318, %v685
      %718 = vst.msk [vmem:[%s276 + $0xd0] sm:$0xff] %vm318, %v686
      %719 = vst.msk [vmem:[%s276 + $0xd8] sm:$0xff] %vm318, %v687
      %720 = vst.msk [vmem:[%s276 + $0xe0] sm:$0xff] %vm318, %v688
      %721 = vst.msk [vmem:[%s276 + $0xe8] sm:$0xff] %vm318, %v689
      %722 = vst.msk [vmem:[%s276 + $0xf0] sm:$0xff] %vm318, %v690
      %723 = vst.msk [vmem:[%s276 + $0xf8] sm:$0xff] %vm318, %v691
      %s724 = smul.u32 16, %s20
      %p725 = scmp.lt.s32.totalorder %s19, 1
      %s726 = scalar_select %p725, %s19, 1
      %p727 = scmp.lt.s32.totalorder %s724, 15
      %s728 = scalar_select %p727, %s724, 15
      %s729 = smul.addr %s728, 2
      %s730 = smul.addr %s726, 32
      %s731 = sadd.s32 %s729, %s730
      %s732 = smul.addr %s731, 8
      %s733 = scalar_lea.vmem %s4, %s732
      // Predicated region
      $region37: #{lateral_connection.1} parent=35 // pred_check
        %p734 = pneg %p145
      $region38: #{lateral_connection.1} parent=35 // pred_check_branch
        %736 = sbr.rel (%p734) target = $region40
      $region39: #{lateral_connection.1} parent=35 // pred_region
        %s737 = smul.u32 16, %s20
      $region40: #{lateral_connection.1} parent=35 // pred_fallthru
        _
    $region36: #{lateral_connection.1} parent=5 // pred_fallthru
      _
    %p738 = scmp.le.s32.totalorder 2, %s10
    // Predicated region
    $region41: #{lateral_connection.1} parent=5 // pred_check
      %p739 = pneg %p738
    $region42: #{lateral_connection.1} parent=5 // pred_check_branch
      %741 = sbr.rel (%p739) target = $region44
    $region43: #{lateral_connection.1} parent=5 // pred_region
      %s742 = ssub.s32 %s10, 2
      // Predicated region
      $region45: #{lateral_connection.1} parent=43 // pred_check
        %p743 = pneg %p151
      $region46: #{lateral_connection.1} parent=43 // pred_check_branch
        %745 = sbr.rel (%p743) target = $region48
      $region47: #{lateral_connection.1} parent=43 // pred_region
        %s746 = smul.u32 16, %s22
        %p747 = scmp.lt.s32.totalorder %s21, 1
        %s748 = scalar_select %p747, %s21, 1
        %p749 = scmp.lt.s32.totalorder %s746, 15
        %s750 = scalar_select %p749, %s746, 15
        %s751 = smul.addr %s750, 2
        %s752 = smul.addr %s748, 32
        %s753 = sadd.s32 %s751, %s752
        %s754 = smul.addr %s753, 8
        %s755 = scalar_lea.vmem %s4, %s754
      $region48: #{lateral_connection.1} parent=43 // pred_fallthru
        _
    $region44: #{lateral_connection.1} parent=5 // pred_fallthru
      _
  $region6: #{lateral_connection.1} parent=0 // loop_footer
    %s14 = sadd.s32 1, %s10
  $region7: #{lateral_connection.1} parent=0 // loop_footer_branch
    %9 = sbr.rel target = $region3
  $region8: #{lateral_connection.1} parent=0 // loop_exit
    _

</llo_original>
